<compile_context>
chip_gen: v6e
topology: v6e:2x2x1
jax: 0.10.0
libtpu: 0.0.40
codegen_flags: <defaults>
</compile_context>

<pallas_src>
import jax
import jax.numpy as jnp
from jax.experimental import pallas as pl
from jax.experimental.pallas import tpu as pltpu


def head_kernel(x_ref, w1_ref, s1_ref, t1_ref,
                w2_ref, s2_ref, t2_ref,
                w3_ref, b3_ref, o_ref):
    # x_ref: (TN, H*W, C) f32, channels-last -> global average pool over axis=1.
    pooled = jnp.mean(x_ref[...], axis=1)                                   # (TN, C) f32

    # Layer 1: Linear + folded (bias + BatchNorm1d) scale/shift + ReLU.
    h = jnp.dot(pooled.astype(w1_ref.dtype), w1_ref[...],
                preferred_element_type=jnp.float32)                         # (TN, B) f32
    h = jnp.maximum(h * s1_ref[...] + t1_ref[...], 0.0)

    # Layer 2: Linear + folded (bias + BatchNorm1d) scale/shift + ReLU.
    h = jnp.dot(h.astype(w2_ref.dtype), w2_ref[...],
                preferred_element_type=jnp.float32)                         # (TN, B) f32
    h = jnp.maximum(h * s2_ref[...] + t2_ref[...], 0.0)

    # Final classifier Linear into a lane-dense (128-padded) class dim.
    out = jnp.dot(h.astype(w3_ref.dtype), w3_ref[...],
                  preferred_element_type=jnp.float32) + b3_ref[...]         # (TN, Kp) f32
    o_ref[...] = out.astype(o_ref.dtype)


def _round_up(a, b):
    return ((a + b - 1) // b) * b


def image_classifier_head(x_nchw, params, *, batch_tile=256):
    """x_nchw: (N, C, H, W) float32.  Returns logits (N, num_classes) float32."""
    N, C, H, W = x_nchw.shape
    HW = H * W

    (w1, b1, g1, be1, rm1, rv1,
     w2, b2, g2, be2, rm2, rv2,
     w3, b3) = params
    eps = 1e-5
    B = w1.shape[1]
    K = w3.shape[1]

    # ---- eval-mode folds (f32): BN y = x*s + (beta - mu*s); bias folded in too.
    s1 = g1 / jnp.sqrt(rv1 + eps)
    t1 = b1 * s1 + (be1 - rm1 * s1)
    s2 = g2 / jnp.sqrt(rv2 + eps)
    t2 = b2 * s2 + (be2 - rm2 * s2)

    # ---- layout plumbing: channels-last so the lane axis is C (dense).
    x = jnp.transpose(x_nchw.reshape(N, C, HW), (0, 2, 1))                  # (N, HW, C)

    # Batch tile: multiple of 8 (sublanes), capped so double-buffered x tiles
    # stay well inside VMEM on every chip (including v7x's 64 MiB).
    TN = min(batch_tile, _round_up(N, 8))
    N_pad = _round_up(N, TN)
    if N_pad != N:
        x = jnp.pad(x, ((0, N_pad - N), (0, 0), (0, 0)))

    # Lane-dense output: pad class dim to a multiple of 128 (unmasked stores).
    Kp = _round_up(K, 128)
    w3p = jnp.pad(w3, ((0, 0), (0, Kp - K)))
    b3p = jnp.pad(b3, ((0, Kp - K),))

    # bf16 matmul operands; accumulation and elementwise math remain f32.
    w1b = w1.astype(jnp.bfloat16)
    w2b = w2.astype(jnp.bfloat16)
    w3b = w3p.astype(jnp.bfloat16)

    def row(v):  # per-feature vectors as lane-dense (1, D) f32 rows
        return v.reshape(1, -1).astype(jnp.float32)

    grid = (N_pad // TN,)
    const2 = lambda i: (0, 0)  # weights/scales: same block every step -> VMEM-resident

    in_specs = [
        pl.BlockSpec((TN, HW, C), lambda i: (i, 0, 0)),   # streamed per batch tile
        pl.BlockSpec((C, B), const2), pl.BlockSpec((1, B), const2),
        pl.BlockSpec((1, B), const2),
        pl.BlockSpec((B, B), const2), pl.BlockSpec((1, B), const2),
        pl.BlockSpec((1, B), const2),
        pl.BlockSpec((B, Kp), const2), pl.BlockSpec((1, Kp), const2),
    ]
    out_specs = pl.BlockSpec((TN, Kp), lambda i: (i, 0))

    # Advisory cost estimate for XLA scheduling.
    flops = 2 * N_pad * (C * B + B * B + B * Kp) + N_pad * HW * C
    bytes_accessed = (N_pad * HW * C * 4
                      + (C * B + B * B + B * Kp) * 2
                      + (4 * B + 2 * Kp) * 4
                      + N_pad * Kp * 4)

    # VMEM budget: 2x double-buffered x tile + resident weights + 2x output tile.
    vmem_bytes = (2 * TN * HW * C * 4
                  + (C * B + B * B + B * Kp) * 2
                  + (4 * B + 2 * Kp) * 4
                  + 2 * TN * Kp * 4)
    vmem_limit = int(min(64 * 1024 * 1024, max(2 * vmem_bytes, 8 * 1024 * 1024)))

    out = pl.pallas_call(
        head_kernel,
        out_shape=jax.ShapeDtypeStruct((N_pad, Kp), jnp.float32),
        grid=grid,
        in_specs=in_specs,
        out_specs=out_specs,
        compiler_params=pltpu.CompilerParams(
            dimension_semantics=("parallel",),
            vmem_limit_bytes=vmem_limit),
        cost_estimate=pl.CostEstimate(
            flops=int(flops), transcendentals=0,
            bytes_accessed=int(bytes_accessed)),
    )(x, w1b, row(s1), row(t1), w2b, row(s2), row(t2), w3b, row(b3p))

    return out[:N, :K]


def make_params(key, in_features, bottleneck_dim, num_classes):
    ks = jax.random.split(key, 8)

    def lin(k, fan_in, fan_out):
        bound = 1.0 / jnp.sqrt(fan_in)
        kw, kb = jax.random.split(k)
        w = jax.random.uniform(kw, (fan_in, fan_out), jnp.float32, -bound, bound)
        b = jax.random.uniform(kb, (fan_out,), jnp.float32, -bound, bound)
        return w, b

    w1, b1 = lin(ks[0], in_features, bottleneck_dim)
    w2, b2 = lin(ks[1], bottleneck_dim, bottleneck_dim)
    w3, b3 = lin(ks[2], bottleneck_dim, num_classes)

    # BatchNorm1d params (deterministic, non-trivial so the fold is exercised)
    g1 = 1.0 + 0.1 * jax.random.normal(ks[3], (bottleneck_dim,), jnp.float32)
    be1 = 0.1 * jax.random.normal(ks[4], (bottleneck_dim,), jnp.float32)
    rm1 = 0.05 * jax.random.normal(ks[5], (bottleneck_dim,), jnp.float32)
    rv1 = 1.0 + 0.1 * jnp.abs(jax.random.normal(ks[6], (bottleneck_dim,), jnp.float32))

    g2 = 1.0 + 0.05 * jnp.cos(jnp.arange(bottleneck_dim, dtype=jnp.float32))
    be2 = 0.05 * jnp.sin(jnp.arange(bottleneck_dim, dtype=jnp.float32))
    rm2 = 0.02 * jnp.sin(0.5 * jnp.arange(bottleneck_dim, dtype=jnp.float32))
    rv2 = 1.0 + 0.05 * jnp.abs(jnp.sin(jnp.arange(bottleneck_dim, dtype=jnp.float32)))

    return (w1, b1, g1, be1, rm1, rv1,
            w2, b2, g2, be2, rm2, rv2,
            w3, b3)


def reference_forward_f32(x_nchw, params):
    """Pure-f32 torch-semantics reference (eval mode)."""
    (w1, b1, g1, be1, rm1, rv1,
     w2, b2, g2, be2, rm2, rv2,
     w3, b3) = params
    eps = 1e-5
    p = jnp.mean(x_nchw, axis=(2, 3))                    # AdaptiveAvgPool2d + Flatten
    h = p @ w1 + b1
    h = (h - rm1) / jnp.sqrt(rv1 + eps) * g1 + be1
    h = jnp.maximum(h, 0.0)
    h = h @ w2 + b2
    h = (h - rm2) / jnp.sqrt(rv2 + eps) * g2 + be2
    h = jnp.maximum(h, 0.0)
    return h @ w3 + b3


def reference_forward_mirror(x_nchw, params):
    """Mirror of the kernel math (bf16 matmul operands, f32 accumulation, folded BN)."""
    (w1, b1, g1, be1, rm1, rv1,
     w2, b2, g2, be2, rm2, rv2,
     w3, b3) = params
    eps = 1e-5
    s1 = g1 / jnp.sqrt(rv1 + eps)
    t1 = b1 * s1 + (be1 - rm1 * s1)
    s2 = g2 / jnp.sqrt(rv2 + eps)
    t2 = b2 * s2 + (be2 - rm2 * s2)
    p = jnp.mean(x_nchw, axis=(2, 3))
    h = jnp.dot(p.astype(jnp.bfloat16), w1.astype(jnp.bfloat16),
                preferred_element_type=jnp.float32)
    h = jnp.maximum(h * s1 + t1, 0.0)
    h = jnp.dot(h.astype(jnp.bfloat16), w2.astype(jnp.bfloat16),
                preferred_element_type=jnp.float32)
    h = jnp.maximum(h * s2 + t2, 0.0)
    return jnp.dot(h.astype(jnp.bfloat16), w3.astype(jnp.bfloat16),
                   preferred_element_type=jnp.float32) + b3


if __name__ == "__main__":
    key = jax.random.PRNGKey(0)
    k_x, k_p = jax.random.split(key)

    # Small demo shapes (in_features = C); N=6 also exercises the batch-pad path.
    N, C, H, W = 6, 256, 4, 4
    bottleneck_dim = 256
    num_classes = 10

    x = jax.random.normal(k_x, (N, C, H, W), jnp.float32)
    params = make_params(k_p, C, bottleneck_dim, num_classes)

    out = image_classifier_head(x, params)
    out = jax.block_until_ready(out)
    assert out.shape == (N, num_classes)

    # Exact-path check: same bf16/f32 mixed-precision math as the kernel.
    mirror = reference_forward_mirror(x, params)
    assert jnp.allclose(out, mirror, atol=1e-3, rtol=1e-3), "mismatch vs bf16 mirror"

    # Semantics check vs the pure-f32 PyTorch-equivalent forward (bf16 weights ->
    # small expected deviation).
    ref = reference_forward_f32(x, params)
    assert jnp.allclose(out, ref, atol=3e-2, rtol=3e-2), "mismatch vs f32 reference"

    print("KERNEL_OK")
</pallas_src>

<mosaic_0001>
module attributes {stable_mosaic.version = 11 : i64} {
  func.func @head_kernel(%arg0: i32, %arg1: memref<8x16x256xf32, #tpu.memory_space<vmem>>, %arg2: memref<256x256xbf16, #tpu.memory_space<vmem>>, %arg3: memref<1x256xf32, #tpu.memory_space<vmem>>, %arg4: memref<1x256xf32, #tpu.memory_space<vmem>>, %arg5: memref<256x256xbf16, #tpu.memory_space<vmem>>, %arg6: memref<1x256xf32, #tpu.memory_space<vmem>>, %arg7: memref<1x256xf32, #tpu.memory_space<vmem>>, %arg8: memref<256x128xbf16, #tpu.memory_space<vmem>>, %arg9: memref<1x128xf32, #tpu.memory_space<vmem>>, %arg10: memref<8x128xf32, #tpu.memory_space<vmem>>) attributes {dimension_semantics = [#tpu.dimension_semantics<parallel>], iteration_bounds = array<i64: 1>, scalar_prefetch = 0 : i64, scratch_operands = 0 : i64, tpu.core_type = #tpu.core_type<tc>, window_params = [{transform_indices = @transform_0, window_bounds = array<i64: 8, 16, 256>}, {pipeline_mode = #tpu.pipeline_mode<synchronous>, transform_indices = @transform_1, window_bounds = array<i64: 256, 256>}, {pipeline_mode = #tpu.pipeline_mode<synchronous>, transform_indices = @transform_2, window_bounds = array<i64: 1, 256>}, {pipeline_mode = #tpu.pipeline_mode<synchronous>, transform_indices = @transform_3, window_bounds = array<i64: 1, 256>}, {pipeline_mode = #tpu.pipeline_mode<synchronous>, transform_indices = @transform_4, window_bounds = array<i64: 256, 256>}, {pipeline_mode = #tpu.pipeline_mode<synchronous>, transform_indices = @transform_5, window_bounds = array<i64: 1, 256>}, {pipeline_mode = #tpu.pipeline_mode<synchronous>, transform_indices = @transform_6, window_bounds = array<i64: 1, 256>}, {pipeline_mode = #tpu.pipeline_mode<synchronous>, transform_indices = @transform_7, window_bounds = array<i64: 256, 128>}, {pipeline_mode = #tpu.pipeline_mode<synchronous>, transform_indices = @transform_8, window_bounds = array<i64: 1, 128>}, {transform_indices = @transform_9, window_bounds = array<i64: 8, 128>}]} {
    %c0 = arith.constant 0 : index
    %c0_0 = arith.constant 0 : index
    %c0_1 = arith.constant 0 : index
    %0 = vector.load %arg1[%c0, %c0_0, %c0_1] : memref<8x16x256xf32, #tpu.memory_space<vmem>>, vector<8x16x256xf32>
    %cst = arith.constant dense<0.000000e+00> : vector<8x256xf32>
    %1 = vector.multi_reduction <add>, %0, %cst [1] : vector<8x16x256xf32> to vector<8x256xf32>
    %cst_2 = arith.constant 1.600000e+01 : f32
    %2 = vector.broadcast %cst_2 : f32 to vector<8x256xf32>
    %3 = arith.divf %1, %2 : vector<8x256xf32>
    %4 = arith.truncf %3 : vector<8x256xf32> to vector<8x256xbf16>
    %c0_3 = arith.constant 0 : index
    %c0_4 = arith.constant 0 : index
    %5 = vector.load %arg2[%c0_3, %c0_4] : memref<256x256xbf16, #tpu.memory_space<vmem>>, vector<256x256xbf16>
    %cst_5 = arith.constant dense<0.000000e+00> : vector<8x256xf32>
    %6 = tpu.matmul %4, %5, %cst_5 {dimension_numbers = #tpu.dot_dimension_numbers<[1], [0], [0], [1], [0, 0, 1, 1], [], []>} : vector<8x256xbf16>, vector<256x256xbf16>, vector<8x256xf32> -> vector<8x256xf32>
    %c0_6 = arith.constant 0 : index
    %c0_7 = arith.constant 0 : index
    %7 = vector.load %arg3[%c0_6, %c0_7] : memref<1x256xf32, #tpu.memory_space<vmem>>, vector<1x256xf32>
    %8 = vector.broadcast %7 : vector<1x256xf32> to vector<8x256xf32>
    %9 = arith.mulf %6, %8 : vector<8x256xf32>
    %c0_8 = arith.constant 0 : index
    %c0_9 = arith.constant 0 : index
    %10 = vector.load %arg4[%c0_8, %c0_9] : memref<1x256xf32, #tpu.memory_space<vmem>>, vector<1x256xf32>
    %11 = vector.broadcast %10 : vector<1x256xf32> to vector<8x256xf32>
    %12 = arith.addf %9, %11 : vector<8x256xf32>
    %cst_10 = arith.constant 0.000000e+00 : f32
    %13 = vector.broadcast %cst_10 : f32 to vector<8x256xf32>
    %14 = arith.maximumf %12, %13 : vector<8x256xf32>
    %15 = arith.truncf %14 : vector<8x256xf32> to vector<8x256xbf16>
    %c0_11 = arith.constant 0 : index
    %c0_12 = arith.constant 0 : index
    %16 = vector.load %arg5[%c0_11, %c0_12] : memref<256x256xbf16, #tpu.memory_space<vmem>>, vector<256x256xbf16>
    %cst_13 = arith.constant dense<0.000000e+00> : vector<8x256xf32>
    %17 = tpu.matmul %15, %16, %cst_13 {dimension_numbers = #tpu.dot_dimension_numbers<[1], [0], [0], [1], [0, 0, 1, 1], [], []>} : vector<8x256xbf16>, vector<256x256xbf16>, vector<8x256xf32> -> vector<8x256xf32>
    %c0_14 = arith.constant 0 : index
    %c0_15 = arith.constant 0 : index
    %18 = vector.load %arg6[%c0_14, %c0_15] : memref<1x256xf32, #tpu.memory_space<vmem>>, vector<1x256xf32>
    %19 = vector.broadcast %18 : vector<1x256xf32> to vector<8x256xf32>
    %20 = arith.mulf %17, %19 : vector<8x256xf32>
    %c0_16 = arith.constant 0 : index
    %c0_17 = arith.constant 0 : index
    %21 = vector.load %arg7[%c0_16, %c0_17] : memref<1x256xf32, #tpu.memory_space<vmem>>, vector<1x256xf32>
    %22 = vector.broadcast %21 : vector<1x256xf32> to vector<8x256xf32>
    %23 = arith.addf %20, %22 : vector<8x256xf32>
    %cst_18 = arith.constant 0.000000e+00 : f32
    %24 = vector.broadcast %cst_18 : f32 to vector<8x256xf32>
    %25 = arith.maximumf %23, %24 : vector<8x256xf32>
    %26 = arith.truncf %25 : vector<8x256xf32> to vector<8x256xbf16>
    %c0_19 = arith.constant 0 : index
    %c0_20 = arith.constant 0 : index
    %27 = vector.load %arg8[%c0_19, %c0_20] : memref<256x128xbf16, #tpu.memory_space<vmem>>, vector<256x128xbf16>
    %cst_21 = arith.constant dense<0.000000e+00> : vector<8x128xf32>
    %28 = tpu.matmul %26, %27, %cst_21 {dimension_numbers = #tpu.dot_dimension_numbers<[1], [0], [0], [1], [0, 0, 1, 1], [], []>} : vector<8x256xbf16>, vector<256x128xbf16>, vector<8x128xf32> -> vector<8x128xf32>
    %c0_22 = arith.constant 0 : index
    %c0_23 = arith.constant 0 : index
    %29 = vector.load %arg9[%c0_22, %c0_23] : memref<1x128xf32, #tpu.memory_space<vmem>>, vector<1x128xf32>
    %30 = vector.broadcast %29 : vector<1x128xf32> to vector<8x128xf32>
    %31 = arith.addf %28, %30 : vector<8x128xf32>
    %c0_24 = arith.constant 0 : index
    %c0_25 = arith.constant 0 : index
    %32 = vector.load %arg10[%c0_24, %c0_25] : memref<8x128xf32, #tpu.memory_space<vmem>>, vector<8x128xf32>
    tpu.vector_store %arg10[%c0_24, %c0_25], %31 {strides = array<i32>} : memref<8x128xf32, #tpu.memory_space<vmem>>, vector<8x128xf32>,
    return
  }
  func.func @transform_0(%arg0: i32) -> (i32, i32, i32) {
    %c0_i32 = arith.constant 0 : i32
    %c0_i32_0 = arith.constant 0 : i32
    %c0_i32_1 = arith.constant 0 : i32
    return %arg0, %c0_i32, %c0_i32_0 : i32, i32, i32
  }
  func.func @transform_1(%arg0: i32) -> (i32, i32) {
    %c0_i32 = arith.constant 0 : i32
    %c0_i32_0 = arith.constant 0 : i32
    %c0_i32_1 = arith.constant 0 : i32
    return %c0_i32, %c0_i32_0 : i32, i32
  }
  func.func @transform_2(%arg0: i32) -> (i32, i32) {
    %c0_i32 = arith.constant 0 : i32
    %c0_i32_0 = arith.constant 0 : i32
    %c0_i32_1 = arith.constant 0 : i32
    return %c0_i32, %c0_i32_0 : i32, i32
  }
  func.func @transform_3(%arg0: i32) -> (i32, i32) {
    %c0_i32 = arith.constant 0 : i32
    %c0_i32_0 = arith.constant 0 : i32
    %c0_i32_1 = arith.constant 0 : i32
    return %c0_i32, %c0_i32_0 : i32, i32
  }
  func.func @transform_4(%arg0: i32) -> (i32, i32) {
    %c0_i32 = arith.constant 0 : i32
    %c0_i32_0 = arith.constant 0 : i32
    %c0_i32_1 = arith.constant 0 : i32
    return %c0_i32, %c0_i32_0 : i32, i32
  }
  func.func @transform_5(%arg0: i32) -> (i32, i32) {
    %c0_i32 = arith.constant 0 : i32
    %c0_i32_0 = arith.constant 0 : i32
    %c0_i32_1 = arith.constant 0 : i32
    return %c0_i32, %c0_i32_0 : i32, i32
  }
  func.func @transform_6(%arg0: i32) -> (i32, i32) {
    %c0_i32 = arith.constant 0 : i32
    %c0_i32_0 = arith.constant 0 : i32
    %c0_i32_1 = arith.constant 0 : i32
    return %c0_i32, %c0_i32_0 : i32, i32
  }
  func.func @transform_7(%arg0: i32) -> (i32, i32) {
    %c0_i32 = arith.constant 0 : i32
    %c0_i32_0 = arith.constant 0 : i32
    %c0_i32_1 = arith.constant 0 : i32
    return %c0_i32, %c0_i32_0 : i32, i32
  }
  func.func @transform_8(%arg0: i32) -> (i32, i32) {
    %c0_i32 = arith.constant 0 : i32
    %c0_i32_0 = arith.constant 0 : i32
    %c0_i32_1 = arith.constant 0 : i32
    return %c0_i32, %c0_i32_0 : i32, i32
  }
  func.func @transform_9(%arg0: i32) -> (i32, i32) {
    %c0_i32 = arith.constant 0 : i32
    %c0_i32_0 = arith.constant 0 : i32
    return %arg0, %c0_i32 : i32, i32
  }
}

</mosaic_0001>

<llo_original>
// kernel: tpu_custom_call.1
$region0: #{tpu_custom_call.1}
  #allocation0 [shape = 'u32[]', space=smem, size = 0x4, offset = 0x4, fixed_abs, tag = 'smem constant byte address 0x4 - core index']
  #allocation1 [shape = 'u32[144,128]{1,0:T(1,128)}', space=vmem, size = 0x12000, scoped, tag = 'internal scratch']
  %s0 = inlined_call_operand.hbm [shape: f32[8,16,256], index: 0, kind: input, shape index: {}]
  %s1 = inlined_call_operand.hbm [shape: bf16[256,256], index: 1, kind: input, shape index: {}]
  %s2 = inlined_call_operand.vmem [shape: f32[1,256], index: 2, kind: input, shape index: {}]
  %s3 = inlined_call_operand.vmem [shape: f32[1,256], index: 3, kind: input, shape index: {}]
  %s4 = inlined_call_operand.hbm [shape: bf16[256,256], index: 4, kind: input, shape index: {}]
  %s5 = inlined_call_operand.vmem [shape: f32[1,256], index: 5, kind: input, shape index: {}]
  %s6 = inlined_call_operand.vmem [shape: f32[1,256], index: 6, kind: input, shape index: {}]
  %s7 = inlined_call_operand.hbm [shape: bf16[256,128], index: 7, kind: input, shape index: {}]
  %s8 = inlined_call_operand.vmem [shape: f32[1,128], index: 8, kind: input, shape index: {}]
  %s9 = inlined_call_operand.hbm [shape: f32[8,128], index: 9, kind: output, shape index: {}]
  %s10 = sld [smem:[#allocation0]]
  $region62: #{tpu_custom_call.1} parent=0
    _
  %s12 = ssub.s32 1, %s10
  %s13 = scalar_select 0, %s12, %s10
  $region1: #{tpu_custom_call.1} parent=0
    #allocation2 [shape = 'u8[131072]{0}', space=vmem, size = 0x20000, scoped, tag = 'input window, operand 0, single buffered']
    #allocation3 [shape = 's32[1]{0}', space=sflag, size = 0x4, scoped, tag = 'scoped memory for tpu_custom_call.1']
    #allocation4 [shape = 's32[1]{0}', space=sflag, size = 0x4, scoped, tag = 'scoped memory for tpu_custom_call.1']
    #allocation5 [shape = 'u8[131072]{0}', space=vmem, size = 0x20000, scoped, tag = 'input window, operand 1, single buffered']
    #allocation6 [shape = 's32[1]{0}', space=sflag, size = 0x4, scoped, tag = 'scoped memory for tpu_custom_call.1']
    #allocation7 [shape = 'u8[131072]{0}', space=vmem, size = 0x20000, scoped, tag = 'input window, operand 4, single buffered']
    #allocation8 [shape = 'u8[65536]{0}', space=vmem, size = 0x10000, scoped, tag = 'input window, operand 7, single buffered']
    #allocation9 [shape = 's32[1]{0}', space=sflag, size = 0x4, scoped, tag = 'scoped memory for tpu_custom_call.1']
    #allocation10 [shape = 'u8[4096]{0}', space=vmem, size = 0x1000, scoped, tag = 'output window, operand 0, single buffered']
    %14 = vsyncpa [#allocation3], 0
    %15 = vsyncpa [#allocation6], 0
    %16 = vsyncpa [#allocation9], 0
    %17 = vsyncpa [#allocation4], 0
    // Predicated region
    $region2: #{tpu_custom_call.1} parent=1 // pred_check
      _
    $region3: #{tpu_custom_call.1} parent=1 // pred_check_branch
      %19 = sbr.rel (0) target = $region5
    $region4: #{tpu_custom_call.1} parent=1 // pred_region
      %s21 = ssub.s32 4096, 4096
      %22 = vsyncadd [#allocation3], %s21
      %s23 = sshll.u32 [#allocation2], 4
      %s24 = int_to_ptr.vmem [resolvable:$true] %s23
      %29 = dma.hbm_to_vmem [thread:$0]  %s0, 4096, %s24, [#allocation3], 256, 256, 16
    $region5: #{tpu_custom_call.1} parent=1 // pred_fallthru
      _
    // Predicated region
    $region6: #{tpu_custom_call.1} parent=1 // pred_check
      _
    $region7: #{tpu_custom_call.1} parent=1 // pred_check_branch
      %31 = sbr.rel (0) target = $region9
    $region8: #{tpu_custom_call.1} parent=1 // pred_region
      %s33 = ssub.s32 4096, 4096
      %34 = vsyncadd [#allocation6], %s33
      %s35 = sshll.u32 [#allocation5], 4
      %s36 = int_to_ptr.vmem [resolvable:$true] %s35
      %41 = dma.hbm_to_vmem [thread:$0]  %s1, 4096, %s36, [#allocation6], 128, 128, 8
    $region9: #{tpu_custom_call.1} parent=1 // pred_fallthru
      _
    // Predicated region
    $region10: #{tpu_custom_call.1} parent=1 // pred_check
      _
    $region11: #{tpu_custom_call.1} parent=1 // pred_check_branch
      %43 = sbr.rel (0) target = $region13
    $region12: #{tpu_custom_call.1} parent=1 // pred_region
      _
    $region13: #{tpu_custom_call.1} parent=1 // pred_fallthru
      _
    // Predicated region
    $region14: #{tpu_custom_call.1} parent=1 // pred_check
      _
    $region15: #{tpu_custom_call.1} parent=1 // pred_check_branch
      %45 = sbr.rel (0) target = $region17
    $region16: #{tpu_custom_call.1} parent=1 // pred_region
      _
    $region17: #{tpu_custom_call.1} parent=1 // pred_fallthru
      _
    // Predicated region
    $region18: #{tpu_custom_call.1} parent=1 // pred_check
      _
    $region19: #{tpu_custom_call.1} parent=1 // pred_check_branch
      %47 = sbr.rel (0) target = $region21
    $region20: #{tpu_custom_call.1} parent=1 // pred_region
      %s49 = ssub.s32 4096, 4096
      %50 = vsyncadd [#allocation6], %s49
      %s51 = sshll.u32 [#allocation7], 4
      %s52 = int_to_ptr.vmem [resolvable:$true] %s51
      %57 = dma.hbm_to_vmem [thread:$0]  %s4, 4096, %s52, [#allocation6], 128, 128, 8
    $region21: #{tpu_custom_call.1} parent=1 // pred_fallthru
      _
    // Predicated region
    $region22: #{tpu_custom_call.1} parent=1 // pred_check
      _
    $region23: #{tpu_custom_call.1} parent=1 // pred_check_branch
      %59 = sbr.rel (0) target = $region25
    $region24: #{tpu_custom_call.1} parent=1 // pred_region
      _
    $region25: #{tpu_custom_call.1} parent=1 // pred_fallthru
      _
    // Predicated region
    $region26: #{tpu_custom_call.1} parent=1 // pred_check
      _
    $region27: #{tpu_custom_call.1} parent=1 // pred_check_branch
      %61 = sbr.rel (0) target = $region29
    $region28: #{tpu_custom_call.1} parent=1 // pred_region
      _
    $region29: #{tpu_custom_call.1} parent=1 // pred_fallthru
      _
    // Predicated region
    $region30: #{tpu_custom_call.1} parent=1 // pred_check
      _
    $region31: #{tpu_custom_call.1} parent=1 // pred_check_branch
      %63 = sbr.rel (0) target = $region33
    $region32: #{tpu_custom_call.1} parent=1 // pred_region
      %s65 = ssub.s32 2048, 2048
      %66 = vsyncadd [#allocation9], %s65
      %s67 = sshll.u32 [#allocation8], 4
      %s68 = int_to_ptr.vmem [resolvable:$true] %s67
      %73 = dma.hbm_to_vmem [thread:$0]  %s7, 2048, %s68, [#allocation9], 64, 64, 4
    $region33: #{tpu_custom_call.1} parent=1 // pred_fallthru
      _
    // Predicated region
    $region34: #{tpu_custom_call.1} parent=1 // pred_check
      _
    $region35: #{tpu_custom_call.1} parent=1 // pred_check_branch
      %75 = sbr.rel (0) target = $region37
    $region36: #{tpu_custom_call.1} parent=1 // pred_region
      _
    $region37: #{tpu_custom_call.1} parent=1 // pred_fallthru
      _
    // Predicated region
    $region38: #{tpu_custom_call.1} parent=1 // pred_check
      _
    $region39: #{tpu_custom_call.1} parent=1 // pred_check_branch
      %77 = sbr.rel (0) target = $region41
    $region40: #{tpu_custom_call.1} parent=1 // pred_region
      %78 = dma.done [#allocation3], 4096
    $region41: #{tpu_custom_call.1} parent=1 // pred_fallthru
      _
    // Predicated region
    $region42: #{tpu_custom_call.1} parent=1 // pred_check
      _
    $region43: #{tpu_custom_call.1} parent=1 // pred_check_branch
      %80 = sbr.rel (0) target = $region45
    $region44: #{tpu_custom_call.1} parent=1 // pred_region
      %81 = dma.done [#allocation6], 4096
    $region45: #{tpu_custom_call.1} parent=1 // pred_fallthru
      _
    // Predicated region
    $region46: #{tpu_custom_call.1} parent=1 // pred_check
      _
    $region47: #{tpu_custom_call.1} parent=1 // pred_check_branch
      %83 = sbr.rel (0) target = $region49
    $region48: #{tpu_custom_call.1} parent=1 // pred_region
      %84 = dma.done [#allocation6], 4096
    $region49: #{tpu_custom_call.1} parent=1 // pred_fallthru
      _
    // Predicated region
    $region50: #{tpu_custom_call.1} parent=1 // pred_check
      _
    $region51: #{tpu_custom_call.1} parent=1 // pred_check_branch
      %86 = sbr.rel (0) target = $region53
    $region52: #{tpu_custom_call.1} parent=1 // pred_region
      %87 = dma.done [#allocation9], 2048
    $region53: #{tpu_custom_call.1} parent=1 // pred_fallthru
      _
    %v89 = vld [vmem:[#allocation2] sm:$0xff]
    %v90 = vld [vmem:[#allocation2 + $0x8] sm:$0xff]
    %v91 = vld [vmem:[#allocation2 + $0x10] sm:$0xff]
    %v92 = vld [vmem:[#allocation2 + $0x18] sm:$0xff]
    %v93 = vld [vmem:[#allocation2 + $0x20] sm:$0xff]
    %v94 = vld [vmem:[#allocation2 + $0x28] sm:$0xff]
    %v95 = vld [vmem:[#allocation2 + $0x30] sm:$0xff]
    %v96 = vld [vmem:[#allocation2 + $0x38] sm:$0xff]
    %v97 = vld [vmem:[#allocation2 + $0x40] sm:$0xff]
    %v98 = vld [vmem:[#allocation2 + $0x48] sm:$0xff]
    %v99 = vld [vmem:[#allocation2 + $0x50] sm:$0xff]
    %v100 = vld [vmem:[#allocation2 + $0x58] sm:$0xff]
    %v101 = vld [vmem:[#allocation2 + $0x60] sm:$0xff]
    %v102 = vld [vmem:[#allocation2 + $0x68] sm:$0xff]
    %v103 = vld [vmem:[#allocation2 + $0x70] sm:$0xff]
    %v104 = vld [vmem:[#allocation2 + $0x78] sm:$0xff]
    %v105 = vld [vmem:[#allocation2 + $0x80] sm:$0xff]
    %v106 = vld [vmem:[#allocation2 + $0x88] sm:$0xff]
    %v107 = vld [vmem:[#allocation2 + $0x90] sm:$0xff]
    %v108 = vld [vmem:[#allocation2 + $0x98] sm:$0xff]
    %v109 = vld [vmem:[#allocation2 + $0xa0] sm:$0xff]
    %v110 = vld [vmem:[#allocation2 + $0xa8] sm:$0xff]
    %v111 = vld [vmem:[#allocation2 + $0xb0] sm:$0xff]
    %v112 = vld [vmem:[#allocation2 + $0xb8] sm:$0xff]
    %v113 = vld [vmem:[#allocation2 + $0xc0] sm:$0xff]
    %v114 = vld [vmem:[#allocation2 + $0xc8] sm:$0xff]
    %v115 = vld [vmem:[#allocation2 + $0xd0] sm:$0xff]
    %v116 = vld [vmem:[#allocation2 + $0xd8] sm:$0xff]
    %v117 = vld [vmem:[#allocation2 + $0xe0] sm:$0xff]
    %v118 = vld [vmem:[#allocation2 + $0xe8] sm:$0xff]
    %v119 = vld [vmem:[#allocation2 + $0xf0] sm:$0xff]
    %v120 = vld [vmem:[#allocation2 + $0xf8] sm:$0xff]
    %v121 = vadd.f32 %v89, %v91
    %v122 = vrot.slane %v121, 4
    %v123 = vadd.f32 %v121, %v122
    %v124 = vrot.slane %v123, 2
    %v125 = vadd.f32 %v123, %v124
    %v126 = vrot.slane %v125, 1
    %v127 = vadd.f32 %v125, %v126
    %v128 = vadd.f32 %v90, %v92
    %v129 = vrot.slane %v128, 4
    %v130 = vadd.f32 %v128, %v129
    %v131 = vrot.slane %v130, 2
    %v132 = vadd.f32 %v130, %v131
    %v133 = vrot.slane %v132, 1
    %v134 = vadd.f32 %v132, %v133
    %v135 = vadd.f32 %v93, %v95
    %v136 = vrot.slane %v135, 4
    %v137 = vadd.f32 %v135, %v136
    %v138 = vrot.slane %v137, 2
    %v139 = vadd.f32 %v137, %v138
    %v140 = vrot.slane %v139, 1
    %v141 = vadd.f32 %v139, %v140
    %v142 = vadd.f32 %v94, %v96
    %v143 = vrot.slane %v142, 4
    %v144 = vadd.f32 %v142, %v143
    %v145 = vrot.slane %v144, 2
    %v146 = vadd.f32 %v144, %v145
    %v147 = vrot.slane %v146, 1
    %v148 = vadd.f32 %v146, %v147
    %v149 = vadd.f32 %v97, %v99
    %v150 = vrot.slane %v149, 4
    %v151 = vadd.f32 %v149, %v150
    %v152 = vrot.slane %v151, 2
    %v153 = vadd.f32 %v151, %v152
    %v154 = vrot.slane %v153, 1
    %v155 = vadd.f32 %v153, %v154
    %v156 = vadd.f32 %v98, %v100
    %v157 = vrot.slane %v156, 4
    %v158 = vadd.f32 %v156, %v157
    %v159 = vrot.slane %v158, 2
    %v160 = vadd.f32 %v158, %v159
    %v161 = vrot.slane %v160, 1
    %v162 = vadd.f32 %v160, %v161
    %v163 = vadd.f32 %v101, %v103
    %v164 = vrot.slane %v163, 4
    %v165 = vadd.f32 %v163, %v164
    %v166 = vrot.slane %v165, 2
    %v167 = vadd.f32 %v165, %v166
    %v168 = vrot.slane %v167, 1
    %v169 = vadd.f32 %v167, %v168
    %v170 = vadd.f32 %v102, %v104
    %v171 = vrot.slane %v170, 4
    %v172 = vadd.f32 %v170, %v171
    %v173 = vrot.slane %v172, 2
    %v174 = vadd.f32 %v172, %v173
    %v175 = vrot.slane %v174, 1
    %v176 = vadd.f32 %v174, %v175
    %v177 = vadd.f32 %v105, %v107
    %v178 = vrot.slane %v177, 4
    %v179 = vadd.f32 %v177, %v178
    %v180 = vrot.slane %v179, 2
    %v181 = vadd.f32 %v179, %v180
    %v182 = vrot.slane %v181, 1
    %v183 = vadd.f32 %v181, %v182
    %v184 = vadd.f32 %v106, %v108
    %v185 = vrot.slane %v184, 4
    %v186 = vadd.f32 %v184, %v185
    %v187 = vrot.slane %v186, 2
    %v188 = vadd.f32 %v186, %v187
    %v189 = vrot.slane %v188, 1
    %v190 = vadd.f32 %v188, %v189
    %v191 = vadd.f32 %v109, %v111
    %v192 = vrot.slane %v191, 4
    %v193 = vadd.f32 %v191, %v192
    %v194 = vrot.slane %v193, 2
    %v195 = vadd.f32 %v193, %v194
    %v196 = vrot.slane %v195, 1
    %v197 = vadd.f32 %v195, %v196
    %v198 = vadd.f32 %v110, %v112
    %v199 = vrot.slane %v198, 4
    %v200 = vadd.f32 %v198, %v199
    %v201 = vrot.slane %v200, 2
    %v202 = vadd.f32 %v200, %v201
    %v203 = vrot.slane %v202, 1
    %v204 = vadd.f32 %v202, %v203
    %v205 = vadd.f32 %v113, %v115
    %v206 = vrot.slane %v205, 4
    %v207 = vadd.f32 %v205, %v206
    %v208 = vrot.slane %v207, 2
    %v209 = vadd.f32 %v207, %v208
    %v210 = vrot.slane %v209, 1
    %v211 = vadd.f32 %v209, %v210
    %v212 = vadd.f32 %v114, %v116
    %v213 = vrot.slane %v212, 4
    %v214 = vadd.f32 %v212, %v213
    %v215 = vrot.slane %v214, 2
    %v216 = vadd.f32 %v214, %v215
    %v217 = vrot.slane %v216, 1
    %v218 = vadd.f32 %v216, %v217
    %v219 = vadd.f32 %v117, %v119
    %v220 = vrot.slane %v219, 4
    %v221 = vadd.f32 %v219, %v220
    %v222 = vrot.slane %v221, 2
    %v223 = vadd.f32 %v221, %v222
    %v224 = vrot.slane %v223, 1
    %v225 = vadd.f32 %v223, %v224
    %v226 = vadd.f32 %v118, %v120
    %v227 = vrot.slane %v226, 4
    %v228 = vadd.f32 %v226, %v227
    %v229 = vrot.slane %v228, 2
    %v230 = vadd.f32 %v228, %v229
    %v231 = vrot.slane %v230, 1
    %v232 = vadd.f32 %v230, %v231
    %v233 = vrcp.pop 16.0
    %v234 = vmul.f32 %v127, %v233
    %v235 = vmul.f32 %v134, %v233
    %v236 = vmul.f32 %v141, %v233
    %v237 = vmul.f32 %v148, %v233
    %v238 = vmul.f32 %v155, %v233
    %v239 = vmul.f32 %v162, %v233
    %v240 = vmul.f32 %v169, %v233
    %v241 = vmul.f32 %v176, %v233
    %v242 = vmul.f32 %v183, %v233
    %v243 = vmul.f32 %v190, %v233
    %v244 = vmul.f32 %v197, %v233
    %v245 = vmul.f32 %v204, %v233
    %v246 = vmul.f32 %v211, %v233
    %v247 = vmul.f32 %v218, %v233
    %v248 = vmul.f32 %v225, %v233
    %v249 = vmul.f32 %v232, %v233
    %v250 = vpack.c.bf16 %v234, %v234
    %v251 = vpack.c.bf16 %v235, %v235
    %v252 = vpack.c.bf16 %v236, %v236
    %v253 = vpack.c.bf16 %v237, %v237
    %v254 = vpack.c.bf16 %v238, %v238
    %v255 = vpack.c.bf16 %v239, %v239
    %v256 = vpack.c.bf16 %v240, %v240
    %v257 = vpack.c.bf16 %v241, %v241
    %v258 = vpack.c.bf16 %v242, %v242
    %v259 = vpack.c.bf16 %v243, %v243
    %v260 = vpack.c.bf16 %v244, %v244
    %v261 = vpack.c.bf16 %v245, %v245
    %v262 = vpack.c.bf16 %v246, %v246
    %v263 = vpack.c.bf16 %v247, %v247
    %v264 = vpack.c.bf16 %v248, %v248
    %v265 = vpack.c.bf16 %v249, %v249
    %v266 = vld [vmem:[#allocation5] sm:$0xff]
    %v267 = vld [vmem:[#allocation5 + $0x8] sm:$0xff]
    %v268 = vld [vmem:[#allocation5 + $0x10] sm:$0xff]
    %v269 = vld [vmem:[#allocation5 + $0x18] sm:$0xff]
    %v270 = vld [vmem:[#allocation5 + $0x20] sm:$0xff]
    %v271 = vld [vmem:[#allocation5 + $0x28] sm:$0xff]
    %v272 = vld [vmem:[#allocation5 + $0x30] sm:$0xff]
    %v273 = vld [vmem:[#allocation5 + $0x38] sm:$0xff]
    %v274 = vld [vmem:[#allocation5 + $0x40] sm:$0xff]
    %v275 = vld [vmem:[#allocation5 + $0x48] sm:$0xff]
    %v276 = vld [vmem:[#allocation5 + $0x50] sm:$0xff]
    %v277 = vld [vmem:[#allocation5 + $0x58] sm:$0xff]
    %v278 = vld [vmem:[#allocation5 + $0x60] sm:$0xff]
    %v279 = vld [vmem:[#allocation5 + $0x68] sm:$0xff]
    %v280 = vld [vmem:[#allocation5 + $0x70] sm:$0xff]
    %v281 = vld [vmem:[#allocation5 + $0x78] sm:$0xff]
    %v282 = vld [vmem:[#allocation5 + $0x80] sm:$0xff]
    %v283 = vld [vmem:[#allocation5 + $0x88] sm:$0xff]
    %v284 = vld [vmem:[#allocation5 + $0x90] sm:$0xff]
    %v285 = vld [vmem:[#allocation5 + $0x98] sm:$0xff]
    %v286 = vld [vmem:[#allocation5 + $0xa0] sm:$0xff]
    %v287 = vld [vmem:[#allocation5 + $0xa8] sm:$0xff]
    %v288 = vld [vmem:[#allocation5 + $0xb0] sm:$0xff]
    %v289 = vld [vmem:[#allocation5 + $0xb8] sm:$0xff]
    %v290 = vld [vmem:[#allocation5 + $0xc0] sm:$0xff]
    %v291 = vld [vmem:[#allocation5 + $0xc8] sm:$0xff]
    %v292 = vld [vmem:[#allocation5 + $0xd0] sm:$0xff]
    %v293 = vld [vmem:[#allocation5 + $0xd8] sm:$0xff]
    %v294 = vld [vmem:[#allocation5 + $0xe0] sm:$0xff]
    %v295 = vld [vmem:[#allocation5 + $0xe8] sm:$0xff]
    %v296 = vld [vmem:[#allocation5 + $0xf0] sm:$0xff]
    %v297 = vld [vmem:[#allocation5 + $0xf8] sm:$0xff]
    %v314 = vunpack.c.l.b16 %v250
    %v315 = vunpack.c.l.b16 %v251
    %v316 = vunpack.c.l.b16 %v252
    %v317 = vunpack.c.l.b16 %v253
    %v318 = vunpack.c.l.b16 %v254
    %v319 = vunpack.c.l.b16 %v255
    %v320 = vunpack.c.l.b16 %v256
    %v321 = vunpack.c.l.b16 %v257
    %v322 = vunpack.c.l.b16 %v258
    %v323 = vunpack.c.l.b16 %v259
    %v324 = vunpack.c.l.b16 %v260
    %v325 = vunpack.c.l.b16 %v261
    %v326 = vunpack.c.l.b16 %v262
    %v327 = vunpack.c.l.b16 %v263
    %v328 = vunpack.c.l.b16 %v264
    %v329 = vunpack.c.l.b16 %v265
    %vm330 = vcmask 1041409
    %v331 = vsel %vm330, %v316, %v314
    %vm332 = vcmask 1042434
    %v333 = vsel %vm332, %v318, %v331
    %vm334 = vcmask 1043459
    %v335 = vsel %vm334, %v320, %v333
    %vm336 = vcmask 1044484
    %v337 = vsel %vm336, %v322, %v335
    %vm338 = vcmask 1045509
    %v339 = vsel %vm338, %v324, %v337
    %vm340 = vcmask 1046534
    %v341 = vsel %vm340, %v326, %v339
    %vm342 = vcmask 1047559
    %v343 = vsel %vm342, %v328, %v341
    %v344 = vsel %vm330, %v317, %v315
    %v345 = vsel %vm332, %v319, %v344
    %v346 = vsel %vm334, %v321, %v345
    %v347 = vsel %vm336, %v323, %v346
    %v348 = vsel %vm338, %v325, %v347
    %v349 = vsel %vm340, %v327, %v348
    %v350 = vsel %vm342, %v329, %v349
    %v351 = vpack.c.b16 %v343, %v343
    %v352 = vpack.c.b16 %v350, %v350
    %v387 = vunpack.c.l.b16 %v266
    %v388 = vunpack.c.h.b16 %v266
    %v389 = vunpack.c.l.b16 %v267
    %v390 = vunpack.c.h.b16 %v267
    %v391 = vunpack.c.l.b16 %v268
    %v392 = vunpack.c.h.b16 %v268
    %v393 = vunpack.c.l.b16 %v269
    %v394 = vunpack.c.h.b16 %v269
    %v395 = vunpack.c.l.b16 %v270
    %v396 = vunpack.c.h.b16 %v270
    %v397 = vunpack.c.l.b16 %v271
    %v398 = vunpack.c.h.b16 %v271
    %v399 = vunpack.c.l.b16 %v272
    %v400 = vunpack.c.h.b16 %v272
    %v401 = vunpack.c.l.b16 %v273
    %v402 = vunpack.c.h.b16 %v273
    %v403 = vunpack.c.l.b16 %v274
    %v404 = vunpack.c.h.b16 %v274
    %v405 = vunpack.c.l.b16 %v275
    %v406 = vunpack.c.h.b16 %v275
    %v407 = vunpack.c.l.b16 %v276
    %v408 = vunpack.c.h.b16 %v276
    %v409 = vunpack.c.l.b16 %v277
    %v410 = vunpack.c.h.b16 %v277
    %v411 = vunpack.c.l.b16 %v278
    %v412 = vunpack.c.h.b16 %v278
    %v413 = vunpack.c.l.b16 %v279
    %v414 = vunpack.c.h.b16 %v279
    %v415 = vunpack.c.l.b16 %v280
    %v416 = vunpack.c.h.b16 %v280
    %v417 = vunpack.c.l.b16 %v281
    %v418 = vunpack.c.h.b16 %v281
    %v419 = vunpack.c.l.b16 %v282
    %v420 = vunpack.c.h.b16 %v282
    %v421 = vunpack.c.l.b16 %v283
    %v422 = vunpack.c.h.b16 %v283
    %v423 = vunpack.c.l.b16 %v284
    %v424 = vunpack.c.h.b16 %v284
    %v425 = vunpack.c.l.b16 %v285
    %v426 = vunpack.c.h.b16 %v285
    %v427 = vunpack.c.l.b16 %v286
    %v428 = vunpack.c.h.b16 %v286
    %v429 = vunpack.c.l.b16 %v287
    %v430 = vunpack.c.h.b16 %v287
    %v431 = vunpack.c.l.b16 %v288
    %v432 = vunpack.c.h.b16 %v288
    %v433 = vunpack.c.l.b16 %v289
    %v434 = vunpack.c.h.b16 %v289
    %v435 = vunpack.c.l.b16 %v290
    %v436 = vunpack.c.h.b16 %v290
    %v437 = vunpack.c.l.b16 %v291
    %v438 = vunpack.c.h.b16 %v291
    %v439 = vunpack.c.l.b16 %v292
    %v440 = vunpack.c.h.b16 %v292
    %v441 = vunpack.c.l.b16 %v293
    %v442 = vunpack.c.h.b16 %v293
    %v443 = vunpack.c.l.b16 %v294
    %v444 = vunpack.c.h.b16 %v294
    %v445 = vunpack.c.l.b16 %v295
    %v446 = vunpack.c.h.b16 %v295
    %v447 = vunpack.c.l.b16 %v296
    %v448 = vunpack.c.h.b16 %v296
    %v449 = vunpack.c.l.b16 %v297
    %v450 = vunpack.c.h.b16 %v297
    %v451 = vpack.c.b16 %v389, %v387
    %v452 = vpack.c.b16 %v390, %v388
    %v453 = vpack.c.b16 %v393, %v391
    %v454 = vpack.c.b16 %v394, %v392
    %v455 = vpack.c.b16 %v397, %v395
    %v456 = vpack.c.b16 %v398, %v396
    %v457 = vpack.c.b16 %v401, %v399
    %v458 = vpack.c.b16 %v402, %v400
    %v459 = vpack.c.b16 %v405, %v403
    %v460 = vpack.c.b16 %v406, %v404
    %v461 = vpack.c.b16 %v409, %v407
    %v462 = vpack.c.b16 %v410, %v408
    %v463 = vpack.c.b16 %v413, %v411
    %v464 = vpack.c.b16 %v414, %v412
    %v465 = vpack.c.b16 %v417, %v415
    %v466 = vpack.c.b16 %v418, %v416
    %v467 = vpack.c.b16 %v421, %v419
    %v468 = vpack.c.b16 %v422, %v420
    %v469 = vpack.c.b16 %v425, %v423
    %v470 = vpack.c.b16 %v426, %v424
    %v471 = vpack.c.b16 %v429, %v427
    %v472 = vpack.c.b16 %v430, %v428
    %v473 = vpack.c.b16 %v433, %v431
    %v474 = vpack.c.b16 %v434, %v432
    %v475 = vpack.c.b16 %v437, %v435
    %v476 = vpack.c.b16 %v438, %v436
    %v477 = vpack.c.b16 %v441, %v439
    %v478 = vpack.c.b16 %v442, %v440
    %v479 = vpack.c.b16 %v445, %v443
    %v480 = vpack.c.b16 %v446, %v444
    %v481 = vpack.c.b16 %v449, %v447
    %v482 = vpack.c.b16 %v450, %v448
    %515 = vmatprep.subr.bf16.mxu0 %v466
    %516 = vmatpush1.bf16.msra.mxu0 %v465
    %517 = vmatprep.subr.bf16.mxu0 %v464
    %518 = vmatpush1.bf16.msra.mxu0 %v463
    %519 = vmatprep.subr.bf16.mxu0 %v462
    %520 = vmatpush1.bf16.msra.mxu0 %v461
    %521 = vmatprep.subr.bf16.mxu0 %v460
    %522 = vmatpush1.bf16.msra.mxu0 %v459
    %523 = vmatprep.subr.bf16.mxu0 %v458
    %524 = vmatpush1.bf16.msra.mxu0 %v457
    %525 = vmatprep.subr.bf16.mxu0 %v456
    %526 = vmatpush1.bf16.msra.mxu0 %v455
    %527 = vmatprep.subr.bf16.mxu0 %v454
    %528 = vmatpush1.bf16.msra.mxu0 %v453
    %529 = vmatprep.subr.bf16.mxu0 %v452
    %530 = vmatpush1.bf16.msra.mxu0 %v451
    %531 = vmatprep.subr.bf16.mxu0 %v482
    %532 = vmatpush2.bf16.msra.mxu0 %v481
    %533 = vmatprep.subr.bf16.mxu0 %v480
    %534 = vmatpush2.bf16.msra.mxu0 %v479
    %535 = vmatprep.subr.bf16.mxu0 %v478
    %536 = vmatpush2.bf16.msra.mxu0 %v477
    %537 = vmatprep.subr.bf16.mxu0 %v476
    %538 = vmatpush2.bf16.msra.mxu0 %v475
    %539 = vmatprep.subr.bf16.mxu0 %v474
    %540 = vmatpush2.bf16.msra.mxu0 %v473
    %541 = vmatprep.subr.bf16.mxu0 %v472
    %542 = vmatpush2.bf16.msra.mxu0 %v471
    %543 = vmatprep.subr.bf16.mxu0 %v470
    %544 = vmatpush2.bf16.msra.mxu0 %v469
    %545 = vmatprep.subr.bf16.mxu0 %v468
    %546 = vmatpush2.bf16.msra.mxu0 %v467
    %547 = vmatprep.mubr.bf16.mxu0 %v352
    %548 = vmatmul.mubr.bf16.gmra.mxu0 %v351
    %v549 = vpop.f32.mrf.mxu0
    %v550 = vadd.f32 0.0, %v549
    %v551 = vpop.f32.mrf.mxu0
    %v552 = vadd.f32 0.0, %v551
    %v553 = vpop.f32.mrf.mxu0
    %v554 = vpop.f32.mrf.mxu0
    %555 = vdwg.mxu0
    %v556 = vld [vmem:[%s2] sm:$0x3]
    %v558 = vlaneseq
    %v559 = vshrl.u32 %v558, 7
    %v560 = vsub.s32 0, %v559
    %v561 = vrot.slane %v556, %v560
    %v562 = vlaneseq
    %v563 = vshrl.u32 %v562, 7
    %v564 = vsub.s32 1, %v563
    %v565 = vrot.slane %v556, %v564
    %v568 = vmul.f32 %v550, %v561
    %v569 = vmul.f32 %v552, %v565
    %v570 = vld [vmem:[%s3] sm:$0x3]
    %v572 = vlaneseq
    %v573 = vshrl.u32 %v572, 7
    %v574 = vsub.s32 0, %v573
    %v575 = vrot.slane %v570, %v574
    %v576 = vlaneseq
    %v577 = vshrl.u32 %v576, 7
    %v578 = vsub.s32 1, %v577
    %v579 = vrot.slane %v570, %v578
    %v582 = vadd.f32 %v568, %v575
    %v583 = vadd.f32 %v569, %v579
    %v584 = vmax.f32 %v582, 0.0
    %v585 = vmax.f32 %v583, 0.0
    %v586 = vpack.c.bf16 %v584, %v584
    %v587 = vpack.c.bf16 %v585, %v585
    %v588 = vld [vmem:[#allocation7] sm:$0xff]
    %v589 = vld [vmem:[#allocation7 + $0x8] sm:$0xff]
    %v590 = vld [vmem:[#allocation7 + $0x10] sm:$0xff]
    %v591 = vld [vmem:[#allocation7 + $0x18] sm:$0xff]
    %v592 = vld [vmem:[#allocation7 + $0x20] sm:$0xff]
    %v593 = vld [vmem:[#allocation7 + $0x28] sm:$0xff]
    %v594 = vld [vmem:[#allocation7 + $0x30] sm:$0xff]
    %v595 = vld [vmem:[#allocation7 + $0x38] sm:$0xff]
    %v596 = vld [vmem:[#allocation7 + $0x40] sm:$0xff]
    %v597 = vld [vmem:[#allocation7 + $0x48] sm:$0xff]
    %v598 = vld [vmem:[#allocation7 + $0x50] sm:$0xff]
    %v599 = vld [vmem:[#allocation7 + $0x58] sm:$0xff]
    %v600 = vld [vmem:[#allocation7 + $0x60] sm:$0xff]
    %v601 = vld [vmem:[#allocation7 + $0x68] sm:$0xff]
    %v602 = vld [vmem:[#allocation7 + $0x70] sm:$0xff]
    %v603 = vld [vmem:[#allocation7 + $0x78] sm:$0xff]
    %v604 = vld [vmem:[#allocation7 + $0x80] sm:$0xff]
    %v605 = vld [vmem:[#allocation7 + $0x88] sm:$0xff]
    %v606 = vld [vmem:[#allocation7 + $0x90] sm:$0xff]
    %v607 = vld [vmem:[#allocation7 + $0x98] sm:$0xff]
    %v608 = vld [vmem:[#allocation7 + $0xa0] sm:$0xff]
    %v609 = vld [vmem:[#allocation7 + $0xa8] sm:$0xff]
    %v610 = vld [vmem:[#allocation7 + $0xb0] sm:$0xff]
    %v611 = vld [vmem:[#allocation7 + $0xb8] sm:$0xff]
    %v612 = vld [vmem:[#allocation7 + $0xc0] sm:$0xff]
    %v613 = vld [vmem:[#allocation7 + $0xc8] sm:$0xff]
    %v614 = vld [vmem:[#allocation7 + $0xd0] sm:$0xff]
    %v615 = vld [vmem:[#allocation7 + $0xd8] sm:$0xff]
    %v616 = vld [vmem:[#allocation7 + $0xe0] sm:$0xff]
    %v617 = vld [vmem:[#allocation7 + $0xe8] sm:$0xff]
    %v618 = vld [vmem:[#allocation7 + $0xf0] sm:$0xff]
    %v619 = vld [vmem:[#allocation7 + $0xf8] sm:$0xff]
    %v652 = vunpack.c.l.b16 %v588
    %v653 = vunpack.c.h.b16 %v588
    %v654 = vunpack.c.l.b16 %v589
    %v655 = vunpack.c.h.b16 %v589
    %v656 = vunpack.c.l.b16 %v590
    %v657 = vunpack.c.h.b16 %v590
    %v658 = vunpack.c.l.b16 %v591
    %v659 = vunpack.c.h.b16 %v591
    %v660 = vunpack.c.l.b16 %v592
    %v661 = vunpack.c.h.b16 %v592
    %v662 = vunpack.c.l.b16 %v593
    %v663 = vunpack.c.h.b16 %v593
    %v664 = vunpack.c.l.b16 %v594
    %v665 = vunpack.c.h.b16 %v594
    %v666 = vunpack.c.l.b16 %v595
    %v667 = vunpack.c.h.b16 %v595
    %v668 = vunpack.c.l.b16 %v596
    %v669 = vunpack.c.h.b16 %v596
    %v670 = vunpack.c.l.b16 %v597
    %v671 = vunpack.c.h.b16 %v597
    %v672 = vunpack.c.l.b16 %v598
    %v673 = vunpack.c.h.b16 %v598
    %v674 = vunpack.c.l.b16 %v599
    %v675 = vunpack.c.h.b16 %v599
    %v676 = vunpack.c.l.b16 %v600
    %v677 = vunpack.c.h.b16 %v600
    %v678 = vunpack.c.l.b16 %v601
    %v679 = vunpack.c.h.b16 %v601
    %v680 = vunpack.c.l.b16 %v602
    %v681 = vunpack.c.h.b16 %v602
    %v682 = vunpack.c.l.b16 %v603
    %v683 = vunpack.c.h.b16 %v603
    %v684 = vunpack.c.l.b16 %v604
    %v685 = vunpack.c.h.b16 %v604
    %v686 = vunpack.c.l.b16 %v605
    %v687 = vunpack.c.h.b16 %v605
    %v688 = vunpack.c.l.b16 %v606
    %v689 = vunpack.c.h.b16 %v606
    %v690 = vunpack.c.l.b16 %v607
    %v691 = vunpack.c.h.b16 %v607
    %v692 = vunpack.c.l.b16 %v608
    %v693 = vunpack.c.h.b16 %v608
    %v694 = vunpack.c.l.b16 %v609
    %v695 = vunpack.c.h.b16 %v609
    %v696 = vunpack.c.l.b16 %v610
    %v697 = vunpack.c.h.b16 %v610
    %v698 = vunpack.c.l.b16 %v611
    %v699 = vunpack.c.h.b16 %v611
    %v700 = vunpack.c.l.b16 %v612
    %v701 = vunpack.c.h.b16 %v612
    %v702 = vunpack.c.l.b16 %v613
    %v703 = vunpack.c.h.b16 %v613
    %v704 = vunpack.c.l.b16 %v614
    %v705 = vunpack.c.h.b16 %v614
    %v706 = vunpack.c.l.b16 %v615
    %v707 = vunpack.c.h.b16 %v615
    %v708 = vunpack.c.l.b16 %v616
    %v709 = vunpack.c.h.b16 %v616
    %v710 = vunpack.c.l.b16 %v617
    %v711 = vunpack.c.h.b16 %v617
    %v712 = vunpack.c.l.b16 %v618
    %v713 = vunpack.c.h.b16 %v618
    %v714 = vunpack.c.l.b16 %v619
    %v715 = vunpack.c.h.b16 %v619
    %v716 = vpack.c.b16 %v654, %v652
    %v717 = vpack.c.b16 %v655, %v653
    %v718 = vpack.c.b16 %v658, %v656
    %v719 = vpack.c.b16 %v659, %v657
    %v720 = vpack.c.b16 %v662, %v660
    %v721 = vpack.c.b16 %v663, %v661
    %v722 = vpack.c.b16 %v666, %v664
    %v723 = vpack.c.b16 %v667, %v665
    %v724 = vpack.c.b16 %v670, %v668
    %v725 = vpack.c.b16 %v671, %v669
    %v726 = vpack.c.b16 %v674, %v672
    %v727 = vpack.c.b16 %v675, %v673
    %v728 = vpack.c.b16 %v678, %v676
    %v729 = vpack.c.b16 %v679, %v677
    %v730 = vpack.c.b16 %v682, %v680
    %v731 = vpack.c.b16 %v683, %v681
    %v732 = vpack.c.b16 %v686, %v684
    %v733 = vpack.c.b16 %v687, %v685
    %v734 = vpack.c.b16 %v690, %v688
    %v735 = vpack.c.b16 %v691, %v689
    %v736 = vpack.c.b16 %v694, %v692
    %v737 = vpack.c.b16 %v695, %v693
    %v738 = vpack.c.b16 %v698, %v696
    %v739 = vpack.c.b16 %v699, %v697
    %v740 = vpack.c.b16 %v702, %v700
    %v741 = vpack.c.b16 %v703, %v701
    %v742 = vpack.c.b16 %v706, %v704
    %v743 = vpack.c.b16 %v707, %v705
    %v744 = vpack.c.b16 %v710, %v708
    %v745 = vpack.c.b16 %v711, %v709
    %v746 = vpack.c.b16 %v714, %v712
    %v747 = vpack.c.b16 %v715, %v713
    %780 = vmatprep.subr.bf16.mxu0 %v731
    %781 = vmatpush1.bf16.msra.mxu0 %v730
    %782 = vmatprep.subr.bf16.mxu0 %v729
    %783 = vmatpush1.bf16.msra.mxu0 %v728
    %784 = vmatprep.subr.bf16.mxu0 %v727
    %785 = vmatpush1.bf16.msra.mxu0 %v726
    %786 = vmatprep.subr.bf16.mxu0 %v725
    %787 = vmatpush1.bf16.msra.mxu0 %v724
    %788 = vmatprep.subr.bf16.mxu0 %v723
    %789 = vmatpush1.bf16.msra.mxu0 %v722
    %790 = vmatprep.subr.bf16.mxu0 %v721
    %791 = vmatpush1.bf16.msra.mxu0 %v720
    %792 = vmatprep.subr.bf16.mxu0 %v719
    %793 = vmatpush1.bf16.msra.mxu0 %v718
    %794 = vmatprep.subr.bf16.mxu0 %v717
    %795 = vmatpush1.bf16.msra.mxu0 %v716
    %796 = vmatprep.subr.bf16.mxu0 %v747
    %797 = vmatpush2.bf16.msra.mxu0 %v746
    %798 = vmatprep.subr.bf16.mxu0 %v745
    %799 = vmatpush2.bf16.msra.mxu0 %v744
    %800 = vmatprep.subr.bf16.mxu0 %v743
    %801 = vmatpush2.bf16.msra.mxu0 %v742
    %802 = vmatprep.subr.bf16.mxu0 %v741
    %803 = vmatpush2.bf16.msra.mxu0 %v740
    %804 = vmatprep.subr.bf16.mxu0 %v739
    %805 = vmatpush2.bf16.msra.mxu0 %v738
    %806 = vmatprep.subr.bf16.mxu0 %v737
    %807 = vmatpush2.bf16.msra.mxu0 %v736
    %808 = vmatprep.subr.bf16.mxu0 %v735
    %809 = vmatpush2.bf16.msra.mxu0 %v734
    %810 = vmatprep.subr.bf16.mxu0 %v733
    %811 = vmatpush2.bf16.msra.mxu0 %v732
    %812 = vmatprep.mubr.bf16.mxu0 %v587
    %813 = vmatmul.mubr.bf16.gmra.mxu0 %v586
    %v814 = vpop.f32.mrf.mxu0
    %v815 = vadd.f32 0.0, %v814
    %v816 = vpop.f32.mrf.mxu0
    %v817 = vadd.f32 0.0, %v816
    %v818 = vpop.f32.mrf.mxu0
    %v819 = vpop.f32.mrf.mxu0
    %820 = vdwg.mxu0
    %v821 = vld [vmem:[%s5] sm:$0x3]
    %v823 = vlaneseq
    %v824 = vshrl.u32 %v823, 7
    %v825 = vsub.s32 0, %v824
    %v826 = vrot.slane %v821, %v825
    %v827 = vlaneseq
    %v828 = vshrl.u32 %v827, 7
    %v829 = vsub.s32 1, %v828
    %v830 = vrot.slane %v821, %v829
    %v833 = vmul.f32 %v815, %v826
    %v834 = vmul.f32 %v817, %v830
    %v835 = vld [vmem:[%s6] sm:$0x3]
    %v837 = vlaneseq
    %v838 = vshrl.u32 %v837, 7
    %v839 = vsub.s32 0, %v838
    %v840 = vrot.slane %v835, %v839
    %v841 = vlaneseq
    %v842 = vshrl.u32 %v841, 7
    %v843 = vsub.s32 1, %v842
    %v844 = vrot.slane %v835, %v843
    %v847 = vadd.f32 %v833, %v840
    %v848 = vadd.f32 %v834, %v844
    %v849 = vmax.f32 %v847, 0.0
    %v850 = vmax.f32 %v848, 0.0
    %v851 = vpack.c.bf16 %v849, %v849
    %v852 = vpack.c.bf16 %v850, %v850
    %v853 = vld [vmem:[#allocation8] sm:$0xf]
    %v854 = vld [vmem:[#allocation8 + $0x4] sm:$0xf]
    %v855 = vld [vmem:[#allocation8 + $0x8] sm:$0xf]
    %v856 = vld [vmem:[#allocation8 + $0xc] sm:$0xf]
    %v857 = vld [vmem:[#allocation8 + $0x10] sm:$0xf]
    %v858 = vld [vmem:[#allocation8 + $0x14] sm:$0xf]
    %v859 = vld [vmem:[#allocation8 + $0x18] sm:$0xf]
    %v860 = vld [vmem:[#allocation8 + $0x1c] sm:$0xf]
    %v861 = vld [vmem:[#allocation8 + $0x20] sm:$0xf]
    %v862 = vld [vmem:[#allocation8 + $0x24] sm:$0xf]
    %v863 = vld [vmem:[#allocation8 + $0x28] sm:$0xf]
    %v864 = vld [vmem:[#allocation8 + $0x2c] sm:$0xf]
    %v865 = vld [vmem:[#allocation8 + $0x30] sm:$0xf]
    %v866 = vld [vmem:[#allocation8 + $0x34] sm:$0xf]
    %v867 = vld [vmem:[#allocation8 + $0x38] sm:$0xf]
    %v868 = vld [vmem:[#allocation8 + $0x3c] sm:$0xf]
    %v869 = vld [vmem:[#allocation8 + $0x40] sm:$0xf]
    %v870 = vld [vmem:[#allocation8 + $0x44] sm:$0xf]
    %v871 = vld [vmem:[#allocation8 + $0x48] sm:$0xf]
    %v872 = vld [vmem:[#allocation8 + $0x4c] sm:$0xf]
    %v873 = vld [vmem:[#allocation8 + $0x50] sm:$0xf]
    %v874 = vld [vmem:[#allocation8 + $0x54] sm:$0xf]
    %v875 = vld [vmem:[#allocation8 + $0x58] sm:$0xf]
    %v876 = vld [vmem:[#allocation8 + $0x5c] sm:$0xf]
    %v877 = vld [vmem:[#allocation8 + $0x60] sm:$0xf]
    %v878 = vld [vmem:[#allocation8 + $0x64] sm:$0xf]
    %v879 = vld [vmem:[#allocation8 + $0x68] sm:$0xf]
    %v880 = vld [vmem:[#allocation8 + $0x6c] sm:$0xf]
    %v881 = vld [vmem:[#allocation8 + $0x70] sm:$0xf]
    %v882 = vld [vmem:[#allocation8 + $0x74] sm:$0xf]
    %v883 = vld [vmem:[#allocation8 + $0x78] sm:$0xf]
    %v884 = vld [vmem:[#allocation8 + $0x7c] sm:$0xf]
    %v885 = vld [vmem:[%s8] sm:$0x1]
    %v887 = vlaneseq
    %v888 = vshrl.u32 %v887, 7
    %v889 = vsub.s32 0, %v888
    %v890 = vrot.slane %v885, %v889
    %v924 = vunpack.c.l.b16 %v853
    %v925 = vunpack.c.l.b16 %v854
    %v926 = vunpack.c.l.b16 %v855
    %v927 = vunpack.c.l.b16 %v856
    %v928 = vunpack.c.l.b16 %v857
    %v929 = vunpack.c.l.b16 %v858
    %v930 = vunpack.c.l.b16 %v859
    %v931 = vunpack.c.l.b16 %v860
    %v932 = vunpack.c.l.b16 %v861
    %v933 = vunpack.c.l.b16 %v862
    %v934 = vunpack.c.l.b16 %v863
    %v935 = vunpack.c.l.b16 %v864
    %v936 = vunpack.c.l.b16 %v865
    %v937 = vunpack.c.l.b16 %v866
    %v938 = vunpack.c.l.b16 %v867
    %v939 = vunpack.c.l.b16 %v868
    %v940 = vunpack.c.l.b16 %v869
    %v941 = vunpack.c.l.b16 %v870
    %v942 = vunpack.c.l.b16 %v871
    %v943 = vunpack.c.l.b16 %v872
    %v944 = vunpack.c.l.b16 %v873
    %v945 = vunpack.c.l.b16 %v874
    %v946 = vunpack.c.l.b16 %v875
    %v947 = vunpack.c.l.b16 %v876
    %v948 = vunpack.c.l.b16 %v877
    %v949 = vunpack.c.l.b16 %v878
    %v950 = vunpack.c.l.b16 %v879
    %v951 = vunpack.c.l.b16 %v880
    %v952 = vunpack.c.l.b16 %v881
    %v953 = vunpack.c.l.b16 %v882
    %v954 = vunpack.c.l.b16 %v883
    %v955 = vunpack.c.l.b16 %v884
    %v956 = vpack.c.b16 %v925, %v924
    %v957 = vpack.c.b16 %v927, %v926
    %v958 = vpack.c.b16 %v929, %v928
    %v959 = vpack.c.b16 %v931, %v930
    %v960 = vpack.c.b16 %v933, %v932
    %v961 = vpack.c.b16 %v935, %v934
    %v962 = vpack.c.b16 %v937, %v936
    %v963 = vpack.c.b16 %v939, %v938
    %v964 = vpack.c.b16 %v941, %v940
    %v965 = vpack.c.b16 %v943, %v942
    %v966 = vpack.c.b16 %v945, %v944
    %v967 = vpack.c.b16 %v947, %v946
    %v968 = vpack.c.b16 %v949, %v948
    %v969 = vpack.c.b16 %v951, %v950
    %v970 = vpack.c.b16 %v953, %v952
    %v971 = vpack.c.b16 %v955, %v954
    %988 = vmatprep.subr.bf16.mxu0 0
    %989 = vmatpush1.bf16.msra.mxu0 %v963
    %990 = vmatprep.subr.bf16.mxu0 0
    %991 = vmatpush1.bf16.msra.mxu0 %v962
    %992 = vmatprep.subr.bf16.mxu0 0
    %993 = vmatpush1.bf16.msra.mxu0 %v961
    %994 = vmatprep.subr.bf16.mxu0 0
    %995 = vmatpush1.bf16.msra.mxu0 %v960
    %996 = vmatprep.subr.bf16.mxu0 0
    %997 = vmatpush1.bf16.msra.mxu0 %v959
    %998 = vmatprep.subr.bf16.mxu0 0
    %999 = vmatpush1.bf16.msra.mxu0 %v958
    %1000 = vmatprep.subr.bf16.mxu0 0
    %1001 = vmatpush1.bf16.msra.mxu0 %v957
    %1002 = vmatprep.subr.bf16.mxu0 0
    %1003 = vmatpush1.bf16.msra.mxu0 %v956
    %1004 = vmatprep.subr.bf16.mxu0 0
    %1005 = vmatpush2.bf16.msra.mxu0 %v971
    %1006 = vmatprep.subr.bf16.mxu0 0
    %1007 = vmatpush2.bf16.msra.mxu0 %v970
    %1008 = vmatprep.subr.bf16.mxu0 0
    %1009 = vmatpush2.bf16.msra.mxu0 %v969
    %1010 = vmatprep.subr.bf16.mxu0 0
    %1011 = vmatpush2.bf16.msra.mxu0 %v968
    %1012 = vmatprep.subr.bf16.mxu0 0
    %1013 = vmatpush2.bf16.msra.mxu0 %v967
    %1014 = vmatprep.subr.bf16.mxu0 0
    %1015 = vmatpush2.bf16.msra.mxu0 %v966
    %1016 = vmatprep.subr.bf16.mxu0 0
    %1017 = vmatpush2.bf16.msra.mxu0 %v965
    %1018 = vmatprep.subr.bf16.mxu0 0
    %1019 = vmatpush2.bf16.msra.mxu0 %v964
    %1020 = vmatprep.mubr.bf16.mxu0 %v852
    %1021 = vmatmul.mubr.bf16.gmra.mxu0 %v851
    %v1022 = vpop.f32.mrf.mxu0
    %v1023 = vadd.f32 %v890, %v1022
    %v1024 = vpop.f32.mrf.mxu0
    %v1025 = vpop.f32.mrf.mxu0
    %v1026 = vpop.f32.mrf.mxu0
    %1027 = vdwg.mxu0
    %1028 = vst [vmem:[#allocation10] sm:$0xff] %v1023
    // Predicated region
    $region54: #{tpu_custom_call.1} parent=1 // pred_check
      _
    $region55: #{tpu_custom_call.1} parent=1 // pred_check_branch
      %1030 = sbr.rel (0) target = $region57
    $region56: #{tpu_custom_call.1} parent=1 // pred_region
      %s1032 = ssub.s32 128, 128
      %1033 = vsyncadd [#allocation4], %s1032
      %s1035 = sshll.u32 [#allocation10], 4
      %s1036 = int_to_ptr.vmem [resolvable:$true] %s1035
      %1038 = dma.vmem_to_hbm [thread:$0]  %s1036, 128, %s9, [#allocation4]
    $region57: #{tpu_custom_call.1} parent=1 // pred_fallthru
      _
    // Predicated region
    $region58: #{tpu_custom_call.1} parent=1 // pred_check
      _
    $region59: #{tpu_custom_call.1} parent=1 // pred_check_branch
      %1040 = sbr.rel (0) target = $region61
    $region60: #{tpu_custom_call.1} parent=1 // pred_region
      %1041 = dma.done [#allocation4], 128
    $region61: #{tpu_custom_call.1} parent=1 // pred_fallthru
      _
    %1042 = vsyncpa [#allocation3], 1
    %1043 = vsyncpa [#allocation6], 1
    %1044 = vsyncpa [#allocation9], 1
    %1045 = vsyncpa [#allocation4], 1

</llo_original>
